<compile_context>
chip_gen: v7x
topology: tpu7x:2x2x1
jax: 0.10.0
libtpu: 0.0.40
codegen_flags: <defaults>
</compile_context>

<pallas_src>
import functools

import jax
import jax.numpy as jnp
from jax import lax
from jax.experimental import pallas as pl
from jax.experimental.pallas import tpu as pltpu


def _se_kernel(x_ref, w1t_ref, b1_ref, w2t_ref, b2_ref, o_ref, acc_ref, *,
               inv_hw, hw_total, hw_blk, needs_mask):
    # x_ref : (B, C, hw_blk)   batch block, native channel-major layout
    # w1t   : (C, Cmid) == fc1.weight[:, :, 0, 0].T    b1: (1, Cmid)
    # w2t   : (Cmid, C) == fc2.weight[:, :, 0, 0].T    b2: (1, C)
    # o_ref : (B, C)
    # acc   : (B, C, acc_w) f32 lane-wide pooled-sum accumulator
    s = pl.program_id(1)
    acc_w = acc_ref.shape[-1]
    n_groups = hw_blk // acc_w

    @pl.when(s == 0)
    def _():
        acc_ref[...] = jnp.zeros_like(acc_ref)

    # f32 accumulation (safe for bf16 inputs; v5e has no bf16 VPU).
    x = x_ref[...].astype(jnp.float32)                       # (B, C, hw_blk)
    if needs_mask:
        # Ragged last spatial tile: zero lanes past the true spatial extent.
        lane = lax.broadcasted_iota(jnp.int32, x.shape, 2)
        limit = hw_total - s * hw_blk
        x = jnp.where(lane < limit, x, 0.0)

    # Streaming loop: only elementwise VPU adds across the hw_blk/acc_w lane
    # groups -- no per-step cross-lane XLU reduction.
    acc = acc_ref[...]
    for g in range(n_groups):
        acc = acc + x[:, :, g * acc_w:(g + 1) * acc_w]
    acc_ref[...] = acc

    @pl.when(s == pl.num_programs(1) - 1)
    def _():
        # Single cross-lane reduce + global-average scale (exact 1/HW).
        pooled = jnp.sum(acc_ref[...], axis=2) * inv_hw      # (B, C)
        # fc1 (1x1 conv == matmul) + ReLU, then fc2.
        h = jnp.dot(pooled, w1t_ref[...],
                    preferred_element_type=jnp.float32) + b1_ref[...]
        h = jnp.maximum(h, 0.0)                              # (B, Cmid)
        out = jnp.dot(h, w2t_ref[...],
                      preferred_element_type=jnp.float32) + b2_ref[...]
        o_ref[...] = out.astype(o_ref.dtype)                 # (B, C)


def _pick_batch_block(n, batch_block):
    """Largest divisor of n that is a multiple of 8 and <= batch_block
    (unmasked, sublane-aligned output stores); fall back to the full batch
    (a full-extent block is always a legal second-to-last block dim)."""
    d = (min(batch_block, n) // 8) * 8
    while d >= 8:
        if n % d == 0:
            return d
        d -= 8
    return n


def _pick_hw_block(hw, b, c, itemsize, budget_bytes, max_block=8192):
    """Lane tile for the spatial (reduction) axis.

    * hw <= 128: full extent (legal block even when not a multiple of 128).
    * otherwise: a multiple of 128 near the per-tile byte budget, with a floor
      that keeps the innermost contiguous DMA run >= ~2 KiB when the budget
      allows.  The grid uses cdiv + in-kernel masking, so the tile never needs
      to divide hw exactly (no collapse to 128 lanes for awkward hw).
    """
    if hw <= 128:
        return hw
    hw_cap = pl.cdiv(hw, 128) * 128          # padded full extent
    per_lane = max(1, b * c * itemsize)      # tile bytes per lane of hw
    target = max(128, (budget_bytes // per_lane) // 128 * 128)
    floor = min(512, hw_cap)                 # >= ~2 KiB contiguous runs (f32)
    if floor * per_lane <= 2 * budget_bytes:
        target = max(target, floor)
    return max(128, min(hw_cap, max_block, target))


def _tpu_vmem_capacity_bytes():
    try:
        info = pltpu.get_tpu_info()
        for name in ("vmem_capacity_bytes", "vmem_size_bytes", "vmem_bytes"):
            v = getattr(info, name, None)
            if v:
                return int(v)
    except Exception:
        pass
    return 64 << 20   # conservative: assume v7x-class (smallest) VMEM


def se_net_pallas(x_nchw, w1, b1, w2, b2, *, batch_block=8, hw_block=None):
    """SE_net forward.  x: (N, C, H, W); w1: (Cmid, C); b1: (Cmid,);
    w2: (C, Cmid); b2: (C,).  Returns (N, C, 1, 1), matching the PyTorch
    module (it returns the excitation logits, not x * sigmoid(.))."""
    N, C, H, W = x_nchw.shape
    Cmid = w1.shape[0]
    HW = H * W
    itemsize = jnp.dtype(x_nchw.dtype).itemsize

    # Metadata-only reshape: NCHW is already spatial-contiguous, so no HBM
    # transpose happens for this purely bandwidth-bound kernel.
    x_nc_hw = x_nchw.reshape(N, C, HW)

    phys_vmem = _tpu_vmem_capacity_bytes()
    is_small_vmem = phys_vmem <= (64 << 20)                  # v7x-class
    budget = (12 << 20) if is_small_vmem else (16 << 20)

    B = _pick_batch_block(N, batch_block)
    HW_BLK = hw_block if hw_block is not None else _pick_hw_block(
        HW, B, C, itemsize, budget)
    needs_mask = (HW % HW_BLK) != 0
    acc_w = 128 if HW_BLK >= 128 else HW_BLK

    # Tiny weight/bias reshapes (negligible traffic).
    w1t = w1.T                      # (C, Cmid)
    w2t = w2.T                      # (Cmid, C)
    b1r = b1.reshape(1, Cmid)
    b2r = b2.reshape(1, C)

    kernel = functools.partial(
        _se_kernel, inv_hw=float(1.0 / HW), hw_total=HW, hw_blk=HW_BLK,
        needs_mask=needs_mask)

    # Generation-aware VMEM limit: double-buffered x tiles + resident weights
    # + accumulator + slack, capped at ~3/4 of physical VMEM
    # (48 MiB on v7x, 96 MiB on v5e/v6e).
    x_tile_bytes = B * C * HW_BLK * itemsize
    acc_bytes = B * C * acc_w * 4
    w_bytes = 2 * (2 * C * Cmid + C + Cmid) * max(itemsize, 4)
    want = 3 * x_tile_bytes + acc_bytes + w_bytes + (4 << 20)
    cap = min((phys_vmem * 3) // 4, 96 << 20)
    vmem_limit = int(min(cap, max(32 << 20, want)))

    # Grid: batch blocks (parallel) x spatial blocks (arbitrary reduction).
    # NOTE: on v7x (2 TensorCores) a batch extent of 1 leaves one core idle;
    # splitting the HW reduction across cores would need a cross-core combine
    # before the fused FC epilogue, so it is intentionally not done here
    # (the kernel is HBM-bandwidth bound either way).
    grid = (N // B, pl.cdiv(HW, HW_BLK))

    out_nc = pl.pallas_call(
        kernel,
        out_shape=jax.ShapeDtypeStruct((N, C), x_nchw.dtype),
        grid_spec=pltpu.PrefetchScalarGridSpec(
            num_scalar_prefetch=0,
            grid=grid,
            in_specs=[
                pl.BlockSpec((B, C, HW_BLK), lambda n, s: (n, 0, s)),
                # Constant-index weight/bias blocks: the pipeline never
                # re-fetches them.  (pl.Buffered(1) would additionally shave
                # their double-buffer footprint; omitted for API portability.)
                pl.BlockSpec((C, Cmid), lambda n, s: (0, 0)),
                pl.BlockSpec((1, Cmid), lambda n, s: (0, 0)),
                pl.BlockSpec((Cmid, C), lambda n, s: (0, 0)),
                pl.BlockSpec((1, C), lambda n, s: (0, 0)),
            ],
            out_specs=pl.BlockSpec((B, C), lambda n, s: (n, 0)),
            scratch_shapes=[pltpu.VMEM((B, C, acc_w), jnp.float32)],
        ),
        compiler_params=pltpu.CompilerParams(
            dimension_semantics=("parallel", "arbitrary"),
            vmem_limit_bytes=vmem_limit,
        ),
    )(x_nc_hw, w1t, b1r, w2t, b2r)

    # Back to the PyTorch output shape (N, C, 1, 1).
    return out_nc.reshape(N, C, 1, 1)


def se_net_reference(x_nchw, w1, b1, w2, b2):
    """Pure-JAX reference matching the PyTorch module."""
    pooled = jnp.mean(x_nchw, axis=(2, 3))                   # (N, C)
    h = jnp.maximum(pooled @ w1.T + b1[None, :], 0.0)        # (N, Cmid)
    out = h @ w2.T + b2[None, :]                             # (N, C)
    return out.reshape(*out.shape, 1, 1)


def _make_inputs(key, n, c, h, w, reduction):
    cmid = max(1, c // reduction)
    kx, kw1, kb1, kw2, kb2 = jax.random.split(key, 5)
    x = jax.random.normal(kx, (n, c, h, w), dtype=jnp.float32)
    w1 = jax.random.normal(kw1, (cmid, c), dtype=jnp.float32) * 0.1
    b1 = jax.random.normal(kb1, (cmid,), dtype=jnp.float32) * 0.1
    w2 = jax.random.normal(kw2, (c, cmid), dtype=jnp.float32) * 0.1
    b2 = jax.random.normal(kb2, (c,), dtype=jnp.float32) * 0.1
    return x, w1, b1, w2, b2


if __name__ == "__main__":
    key = jax.random.PRNGKey(0)
    k1, k2 = jax.random.split(key)

    # Case 1: small SE block (B = N full-extent path, single spatial step).
    x, w1, b1, w2, b2 = _make_inputs(k1, 2, 32, 16, 16, reduction=16)
    out = jax.block_until_ready(se_net_pallas(x, w1, b1, w2, b2))
    ref = se_net_reference(x, w1, b1, w2, b2)
    assert out.shape == (2, 32, 1, 1), out.shape
    assert jnp.allclose(out, ref, atol=1e-5, rtol=1e-5), "case 1 mismatch"

    # Case 2: multiple-of-8 batch block, multi-step HW reduction with a
    # ragged (masked) last spatial tile: HW = 400, HW_BLK = 128 -> 4 steps.
    x, w1, b1, w2, b2 = _make_inputs(k2, 8, 32, 20, 20, reduction=16)
    out = jax.block_until_ready(se_net_pallas(x, w1, b1, w2, b2, hw_block=128))
    ref = se_net_reference(x, w1, b1, w2, b2)
    assert out.shape == (8, 32, 1, 1), out.shape
    assert jnp.allclose(out, ref, atol=1e-5, rtol=1e-5), "case 2 mismatch"

    print("KERNEL_OK")
</pallas_src>

<mosaic_0001>
module attributes {stable_mosaic.version = 11 : i64} {
  func.func @_se_kernel(%arg0: i32, %arg1: i32, %arg2: memref<2x32x256xf32, #tpu.memory_space<vmem>>, %arg3: memref<32x2xf32, #tpu.memory_space<vmem>>, %arg4: memref<1x2xf32, #tpu.memory_space<vmem>>, %arg5: memref<2x32xf32, #tpu.memory_space<vmem>>, %arg6: memref<1x32xf32, #tpu.memory_space<vmem>>, %arg7: memref<2x32xf32, #tpu.memory_space<vmem>>, %arg8: memref<2x32x128xf32, #tpu.memory_space<vmem>>) attributes {dimension_semantics = [#tpu.dimension_semantics<parallel>, #tpu.dimension_semantics<arbitrary>], iteration_bounds = array<i64: 1, 1>, scalar_prefetch = 0 : i64, scratch_operands = 1 : i64, tpu.core_type = #tpu.core_type<tc>, window_params = [{transform_indices = @transform_0, window_bounds = array<i64: 2, 32, 256>}, {pipeline_mode = #tpu.pipeline_mode<synchronous>, transform_indices = @transform_1, window_bounds = array<i64: 32, 2>}, {pipeline_mode = #tpu.pipeline_mode<synchronous>, transform_indices = @transform_2, window_bounds = array<i64: 1, 2>}, {pipeline_mode = #tpu.pipeline_mode<synchronous>, transform_indices = @transform_3, window_bounds = array<i64: 2, 32>}, {pipeline_mode = #tpu.pipeline_mode<synchronous>, transform_indices = @transform_4, window_bounds = array<i64: 1, 32>}, {transform_indices = @transform_5, window_bounds = array<i64: 2, 32>}]} {
    %c0_i32 = arith.constant 0 : i32
    %0 = arith.cmpi eq, %arg1, %c0_i32 : i32
    %1 = arith.extui %0 : i1 to i32
    %c0_i32_0 = arith.constant 0 : i32
    %2 = arith.cmpi ne, %1, %c0_i32_0 : i32
    scf.if %2 {
      %cst = arith.constant 0.000000e+00 : f32
      %13 = vector.broadcast %cst : f32 to vector<2x32x128xf32>
      %c0_11 = arith.constant 0 : index
      %c0_12 = arith.constant 0 : index
      %c0_13 = arith.constant 0 : index
      %14 = vector.load %arg8[%c0_11, %c0_12, %c0_13] : memref<2x32x128xf32, #tpu.memory_space<vmem>>, vector<2x32x128xf32>
      tpu.vector_store %arg8[%c0_11, %c0_12, %c0_13], %13 {strides = array<i32>} : memref<2x32x128xf32, #tpu.memory_space<vmem>>, vector<2x32x128xf32>,
    } else {
    }
    %c0 = arith.constant 0 : index
    %c0_1 = arith.constant 0 : index
    %c0_2 = arith.constant 0 : index
    %3 = vector.load %arg2[%c0, %c0_1, %c0_2] : memref<2x32x256xf32, #tpu.memory_space<vmem>>, vector<2x32x256xf32>
    %c0_3 = arith.constant 0 : index
    %c0_4 = arith.constant 0 : index
    %c0_5 = arith.constant 0 : index
    %4 = vector.load %arg8[%c0_3, %c0_4, %c0_5] : memref<2x32x128xf32, #tpu.memory_space<vmem>>, vector<2x32x128xf32>
    %5 = vector.extract_strided_slice %3 {offsets = [0, 0, 0], sizes = [2, 32, 128], strides = [1, 1, 1]} : vector<2x32x256xf32> to vector<2x32x128xf32>
    %6 = arith.addf %4, %5 : vector<2x32x128xf32>
    %7 = vector.extract_strided_slice %3 {offsets = [0, 0, 128], sizes = [2, 32, 128], strides = [1, 1, 1]} : vector<2x32x256xf32> to vector<2x32x128xf32>
    %8 = arith.addf %6, %7 : vector<2x32x128xf32>
    %c0_6 = arith.constant 0 : index
    %c0_7 = arith.constant 0 : index
    %c0_8 = arith.constant 0 : index
    %9 = vector.load %arg8[%c0_6, %c0_7, %c0_8] : memref<2x32x128xf32, #tpu.memory_space<vmem>>, vector<2x32x128xf32>
    tpu.vector_store %arg8[%c0_6, %c0_7, %c0_8], %8 {strides = array<i32>} : memref<2x32x128xf32, #tpu.memory_space<vmem>>, vector<2x32x128xf32>,
    %c0_i32_9 = arith.constant 0 : i32
    %10 = arith.cmpi eq, %arg1, %c0_i32_9 : i32
    %11 = arith.extui %10 : i1 to i32
    %c0_i32_10 = arith.constant 0 : i32
    %12 = arith.cmpi ne, %11, %c0_i32_10 : i32
    scf.if %12 {
      %c0_11 = arith.constant 0 : index
      %c0_12 = arith.constant 0 : index
      %c0_13 = arith.constant 0 : index
      %13 = vector.load %arg8[%c0_11, %c0_12, %c0_13] : memref<2x32x128xf32, #tpu.memory_space<vmem>>, vector<2x32x128xf32>
      %cst = arith.constant dense<0.000000e+00> : vector<2x32xf32>
      %14 = vector.multi_reduction <add>, %13, %cst [2] : vector<2x32x128xf32> to vector<2x32xf32>
      %cst_14 = arith.constant 3.906250e-03 : f32
      %15 = vector.broadcast %cst_14 : f32 to vector<2x32xf32>
      %16 = arith.mulf %14, %15 : vector<2x32xf32>
      %c0_15 = arith.constant 0 : index
      %c0_16 = arith.constant 0 : index
      %17 = vector.load %arg3[%c0_15, %c0_16] : memref<32x2xf32, #tpu.memory_space<vmem>>, vector<32x2xf32>
      %cst_17 = arith.constant dense<0.000000e+00> : vector<2x2xf32>
      %18 = tpu.matmul %16, %17, %cst_17 {dimension_numbers = #tpu.dot_dimension_numbers<[1], [0], [0], [1], [0, 0, 1, 1], [], []>} : vector<2x32xf32>, vector<32x2xf32>, vector<2x2xf32> -> vector<2x2xf32>
      %c0_18 = arith.constant 0 : index
      %c0_19 = arith.constant 0 : index
      %19 = vector.load %arg4[%c0_18, %c0_19] : memref<1x2xf32, #tpu.memory_space<vmem>>, vector<1x2xf32>
      %20 = vector.broadcast %19 : vector<1x2xf32> to vector<2x2xf32>
      %21 = arith.addf %18, %20 : vector<2x2xf32>
      %cst_20 = arith.constant 0.000000e+00 : f32
      %22 = vector.broadcast %cst_20 : f32 to vector<2x2xf32>
      %23 = arith.maximumf %21, %22 : vector<2x2xf32>
      %c0_21 = arith.constant 0 : index
      %c0_22 = arith.constant 0 : index
      %24 = vector.load %arg5[%c0_21, %c0_22] : memref<2x32xf32, #tpu.memory_space<vmem>>, vector<2x32xf32>
      %cst_23 = arith.constant dense<0.000000e+00> : vector<2x32xf32>
      %25 = tpu.matmul %23, %24, %cst_23 {dimension_numbers = #tpu.dot_dimension_numbers<[1], [0], [0], [1], [0, 0, 1, 1], [], []>} : vector<2x2xf32>, vector<2x32xf32>, vector<2x32xf32> -> vector<2x32xf32>
      %c0_24 = arith.constant 0 : index
      %c0_25 = arith.constant 0 : index
      %26 = vector.load %arg6[%c0_24, %c0_25] : memref<1x32xf32, #tpu.memory_space<vmem>>, vector<1x32xf32>
      %27 = vector.broadcast %26 : vector<1x32xf32> to vector<2x32xf32>
      %28 = arith.addf %25, %27 : vector<2x32xf32>
      %c0_26 = arith.constant 0 : index
      %c0_27 = arith.constant 0 : index
      %29 = vector.load %arg7[%c0_26, %c0_27] : memref<2x32xf32, #tpu.memory_space<vmem>>, vector<2x32xf32>
      tpu.vector_store %arg7[%c0_26, %c0_27], %28 {strides = array<i32>} : memref<2x32xf32, #tpu.memory_space<vmem>>, vector<2x32xf32>,
    } else {
    }
    return
  }
  func.func @transform_0(%arg0: i32, %arg1: i32) -> (i32, i32, i32) {
    %c0_i32 = arith.constant 0 : i32
    %c0_i32_0 = arith.constant 0 : i32
    return %arg0, %c0_i32, %arg1 : i32, i32, i32
  }
  func.func @transform_1(%arg0: i32, %arg1: i32) -> (i32, i32) {
    %c0_i32 = arith.constant 0 : i32
    %c0_i32_0 = arith.constant 0 : i32
    %c0_i32_1 = arith.constant 0 : i32
    return %c0_i32, %c0_i32_0 : i32, i32
  }
  func.func @transform_2(%arg0: i32, %arg1: i32) -> (i32, i32) {
    %c0_i32 = arith.constant 0 : i32
    %c0_i32_0 = arith.constant 0 : i32
    %c0_i32_1 = arith.constant 0 : i32
    return %c0_i32, %c0_i32_0 : i32, i32
  }
  func.func @transform_3(%arg0: i32, %arg1: i32) -> (i32, i32) {
    %c0_i32 = arith.constant 0 : i32
    %c0_i32_0 = arith.constant 0 : i32
    %c0_i32_1 = arith.constant 0 : i32
    return %c0_i32, %c0_i32_0 : i32, i32
  }
  func.func @transform_4(%arg0: i32, %arg1: i32) -> (i32, i32) {
    %c0_i32 = arith.constant 0 : i32
    %c0_i32_0 = arith.constant 0 : i32
    %c0_i32_1 = arith.constant 0 : i32
    return %c0_i32, %c0_i32_0 : i32, i32
  }
  func.func @transform_5(%arg0: i32, %arg1: i32) -> (i32, i32) {
    %c0_i32 = arith.constant 0 : i32
    %c0_i32_0 = arith.constant 0 : i32
    return %arg0, %c0_i32 : i32, i32
  }
}

</mosaic_0001>

<llo_original>
// kernel: tpu_custom_call.1
$region0: #{tpu_custom_call.1}
  #allocation0 [shape = 'u32[]', space=smem, size = 0x4, offset = 0x4, fixed_abs, tag = 'smem constant byte address 0x4 - core index']
  #allocation1 [shape = 'u32[144,128]{1,0:T(1,128)}', space=vmem, size = 0x12000, scoped, tag = 'internal scratch']
  #allocation2 [shape = 'f32[2,32,128]{2,1,0:T(8,128)}', space=vmem, size = 0x8000, scoped, tag = 'scratch operand']
  %s0 = inlined_call_operand.hbm [shape: f32[2,32,256], index: 0, kind: input, shape index: {}]
  %s1 = inlined_call_operand.vmem [shape: f32[32,2], index: 1, kind: input, shape index: {}]
  %s2 = inlined_call_operand.vmem [shape: f32[1,2], index: 2, kind: input, shape index: {}]
  %s3 = inlined_call_operand.vmem [shape: f32[2,32], index: 3, kind: input, shape index: {}]
  %s4 = inlined_call_operand.vmem [shape: f32[1,32], index: 4, kind: input, shape index: {}]
  %s5 = inlined_call_operand.hbm [shape: f32[2,32], index: 5, kind: output, shape index: {}]
  %s6 = sld [smem:[#allocation0]]
  $region42: #{tpu_custom_call.1} parent=0
    _
  %s8 = ssub.s32 1, %s6
  %s9 = scalar_select 0, %s8, %s6
  $region1: #{tpu_custom_call.1} parent=0
    #allocation3 [shape = 'u8[65536]{0}', space=vmem, size = 0x10000, scoped, tag = 'input window, operand 0, single buffered']
    #allocation4 [shape = 's32[1]{0}', space=sflag, size = 0x4, scoped, tag = 'scoped memory for tpu_custom_call.1']
    #allocation5 [shape = 's32[1]{0}', space=sflag, size = 0x4, scoped, tag = 'scoped memory for tpu_custom_call.1']
    #allocation6 [shape = 'u8[1024]{0}', space=vmem, size = 0x400, scoped, tag = 'output window, operand 0, single buffered']
    %10 = vsyncpa [#allocation4], 0
    %11 = vsyncpa [#allocation5], 0
    // Predicated region
    $region2: #{tpu_custom_call.1} parent=1 // pred_check
      _
    $region3: #{tpu_custom_call.1} parent=1 // pred_check_branch
      %13 = sbr.rel (0) target = $region5
    $region4: #{tpu_custom_call.1} parent=1 // pred_region
      %s15 = ssub.s32 2048, 2048
      %16 = vsyncadd [#allocation4], %s15
      %s17 = sshll.u32 [#allocation3], 4
      %s18 = int_to_ptr.vmem [resolvable:$true] %s17
      %23 = dma.hbm_to_vmem [thread:$0]  %s0, 2048, %s18, [#allocation4], 256, 256, 16
    $region5: #{tpu_custom_call.1} parent=1 // pred_fallthru
      _
    // Predicated region
    $region6: #{tpu_custom_call.1} parent=1 // pred_check
      _
    $region7: #{tpu_custom_call.1} parent=1 // pred_check_branch
      %25 = sbr.rel (0) target = $region9
    $region8: #{tpu_custom_call.1} parent=1 // pred_region
      _
    $region9: #{tpu_custom_call.1} parent=1 // pred_fallthru
      _
    // Predicated region
    $region10: #{tpu_custom_call.1} parent=1 // pred_check
      _
    $region11: #{tpu_custom_call.1} parent=1 // pred_check_branch
      %27 = sbr.rel (0) target = $region13
    $region12: #{tpu_custom_call.1} parent=1 // pred_region
      _
    $region13: #{tpu_custom_call.1} parent=1 // pred_fallthru
      _
    // Predicated region
    $region14: #{tpu_custom_call.1} parent=1 // pred_check
      _
    $region15: #{tpu_custom_call.1} parent=1 // pred_check_branch
      %29 = sbr.rel (0) target = $region17
    $region16: #{tpu_custom_call.1} parent=1 // pred_region
      _
    $region17: #{tpu_custom_call.1} parent=1 // pred_fallthru
      _
    // Predicated region
    $region18: #{tpu_custom_call.1} parent=1 // pred_check
      _
    $region19: #{tpu_custom_call.1} parent=1 // pred_check_branch
      %31 = sbr.rel (0) target = $region21
    $region20: #{tpu_custom_call.1} parent=1 // pred_region
      _
    $region21: #{tpu_custom_call.1} parent=1 // pred_fallthru
      _
    // Predicated region
    $region22: #{tpu_custom_call.1} parent=1 // pred_check
      _
    $region23: #{tpu_custom_call.1} parent=1 // pred_check_branch
      %33 = sbr.rel (0) target = $region25
    $region24: #{tpu_custom_call.1} parent=1 // pred_region
      %34 = dma.done [#allocation4], 2048
    $region25: #{tpu_custom_call.1} parent=1 // pred_fallthru
      _
    %p35 = scmp.eq.s32.totalorder 0, 0
    // Predicated region
    $region26: #{tpu_custom_call.1} parent=1 // pred_check
      %p36 = pneg %p35
    $region27: #{tpu_custom_call.1} parent=1 // pred_check_branch
      %38 = sbr.rel (%p36) target = $region29
    $region28: #{tpu_custom_call.1} parent=1 // pred_region
      %39 = vst [vmem:[#allocation2] sm:$0xff] 0.0
      %40 = vst [vmem:[#allocation2 + $0x8] sm:$0xff] 0.0
      %41 = vst [vmem:[#allocation2 + $0x10] sm:$0xff] 0.0
      %42 = vst [vmem:[#allocation2 + $0x18] sm:$0xff] 0.0
      %43 = vst [vmem:[#allocation2 + $0x20] sm:$0xff] 0.0
      %44 = vst [vmem:[#allocation2 + $0x28] sm:$0xff] 0.0
      %45 = vst [vmem:[#allocation2 + $0x30] sm:$0xff] 0.0
      %46 = vst [vmem:[#allocation2 + $0x38] sm:$0xff] 0.0
    $region29: #{tpu_custom_call.1} parent=1 // pred_fallthru
      _
    %v47 = vld [vmem:[#allocation3] sm:$0xff]
    %v48 = vld [vmem:[#allocation3 + $0x8] sm:$0xff]
    %v49 = vld [vmem:[#allocation3 + $0x10] sm:$0xff]
    %v50 = vld [vmem:[#allocation3 + $0x18] sm:$0xff]
    %v51 = vld [vmem:[#allocation3 + $0x20] sm:$0xff]
    %v52 = vld [vmem:[#allocation3 + $0x28] sm:$0xff]
    %v53 = vld [vmem:[#allocation3 + $0x30] sm:$0xff]
    %v54 = vld [vmem:[#allocation3 + $0x38] sm:$0xff]
    %v55 = vld [vmem:[#allocation3 + $0x40] sm:$0xff]
    %v56 = vld [vmem:[#allocation3 + $0x48] sm:$0xff]
    %v57 = vld [vmem:[#allocation3 + $0x50] sm:$0xff]
    %v58 = vld [vmem:[#allocation3 + $0x58] sm:$0xff]
    %v59 = vld [vmem:[#allocation3 + $0x60] sm:$0xff]
    %v60 = vld [vmem:[#allocation3 + $0x68] sm:$0xff]
    %v61 = vld [vmem:[#allocation3 + $0x70] sm:$0xff]
    %v62 = vld [vmem:[#allocation3 + $0x78] sm:$0xff]
    %v63 = vld [vmem:[#allocation2] sm:$0xff]
    %v64 = vld [vmem:[#allocation2 + $0x8] sm:$0xff]
    %v65 = vld [vmem:[#allocation2 + $0x10] sm:$0xff]
    %v66 = vld [vmem:[#allocation2 + $0x18] sm:$0xff]
    %v67 = vld [vmem:[#allocation2 + $0x20] sm:$0xff]
    %v68 = vld [vmem:[#allocation2 + $0x28] sm:$0xff]
    %v69 = vld [vmem:[#allocation2 + $0x30] sm:$0xff]
    %v70 = vld [vmem:[#allocation2 + $0x38] sm:$0xff]
    %v71 = vadd.f32 %v63, %v47
    %v72 = vadd.f32 %v64, %v49
    %v73 = vadd.f32 %v65, %v51
    %v74 = vadd.f32 %v66, %v53
    %v75 = vadd.f32 %v67, %v55
    %v76 = vadd.f32 %v68, %v57
    %v77 = vadd.f32 %v69, %v59
    %v78 = vadd.f32 %v70, %v61
    %v79 = vadd.f32 %v71, %v48
    %v80 = vadd.f32 %v72, %v50
    %v81 = vadd.f32 %v73, %v52
    %v82 = vadd.f32 %v74, %v54
    %v83 = vadd.f32 %v75, %v56
    %v84 = vadd.f32 %v76, %v58
    %v85 = vadd.f32 %v77, %v60
    %v86 = vadd.f32 %v78, %v62
    %87 = vst [vmem:[#allocation2] sm:$0xff] %v79
    %88 = vst [vmem:[#allocation2 + $0x8] sm:$0xff] %v80
    %89 = vst [vmem:[#allocation2 + $0x10] sm:$0xff] %v81
    %90 = vst [vmem:[#allocation2 + $0x18] sm:$0xff] %v82
    %91 = vst [vmem:[#allocation2 + $0x20] sm:$0xff] %v83
    %92 = vst [vmem:[#allocation2 + $0x28] sm:$0xff] %v84
    %93 = vst [vmem:[#allocation2 + $0x30] sm:$0xff] %v85
    %94 = vst [vmem:[#allocation2 + $0x38] sm:$0xff] %v86
    // Predicated region
    $region30: #{tpu_custom_call.1} parent=1 // pred_check
      %p95 = pneg %p35
    $region31: #{tpu_custom_call.1} parent=1 // pred_check_branch
      %97 = sbr.rel (%p95) target = $region33
    $region32: #{tpu_custom_call.1} parent=1 // pred_region
      %v98 = vld [vmem:[#allocation2] sm:$0xff]
      %v99 = vld [vmem:[#allocation2 + $0x8] sm:$0xff]
      %v100 = vld [vmem:[#allocation2 + $0x10] sm:$0xff]
      %v101 = vld [vmem:[#allocation2 + $0x18] sm:$0xff]
      %v102 = vld [vmem:[#allocation2 + $0x20] sm:$0xff]
      %v103 = vld [vmem:[#allocation2 + $0x28] sm:$0xff]
      %v104 = vld [vmem:[#allocation2 + $0x30] sm:$0xff]
      %v105 = vld [vmem:[#allocation2 + $0x38] sm:$0xff]
      %106 = vadd.xlane.f32.xlu0 %v98
      %v107 = vpop.xlane.xlu0 %106
      %108 = vadd.xlane.f32.xlu0 %v99
      %v109 = vpop.xlane.xlu0 %108
      %110 = vadd.xlane.f32.xlu0 %v100
      %v111 = vpop.xlane.xlu0 %110
      %112 = vadd.xlane.f32.xlu0 %v101
      %v113 = vpop.xlane.xlu0 %112
      %114 = vadd.xlane.f32.xlu0 %v102
      %v115 = vpop.xlane.xlu0 %114
      %116 = vadd.xlane.f32.xlu0 %v103
      %v117 = vpop.xlane.xlu0 %116
      %118 = vadd.xlane.f32.xlu0 %v104
      %v119 = vpop.xlane.xlu0 %118
      %120 = vadd.xlane.f32.xlu0 %v105
      %v121 = vpop.xlane.xlu0 %120
      %v122 = vmul.f32 %v107, 0.00390625
      %v123 = vmul.f32 %v109, 0.00390625
      %v124 = vmul.f32 %v111, 0.00390625
      %v125 = vmul.f32 %v113, 0.00390625
      %v126 = vmul.f32 %v115, 0.00390625
      %v127 = vmul.f32 %v117, 0.00390625
      %v128 = vmul.f32 %v119, 0.00390625
      %v129 = vmul.f32 %v121, 0.00390625
      %v130 = vld [vmem:[%s1] sm:$0xff]
      %v131 = vld [vmem:[%s1 + $0x8] sm:$0xff]
      %v132 = vld [vmem:[%s1 + $0x10] sm:$0xff]
      %v133 = vld [vmem:[%s1 + $0x18] sm:$0xff]
      %v134 = vld [vmem:[%s2] sm:$0x1]
      %v136 = vlaneseq
      %v137 = vshrl.u32 %v136, 7
      %v138 = vsub.s32 0, %v137
      %v139 = vrot.slane %v134, %v138
      %v149 = vlaneseq
      %v150 = vand.u32 %v149, 127
      %v151 = vlaneseq
      %v152 = vshrl.u32 %v151, 7
      %v153 = vsub.s32 %v150, %v152
      %v154 = vrot.slane %v122, %v153
      %v155 = vadd.s32 %v150, 4294967288
      %v156 = vlaneseq
      %v157 = vshrl.u32 %v156, 7
      %v158 = vsub.s32 %v155, %v157
      %v159 = vrot.slane %v123, %v158
      %vm160 = vcmask 130112
      %v161 = vsel %vm160, %v159, %v154
      %v162 = vadd.s32 %v150, 4294967280
      %v163 = vlaneseq
      %v164 = vshrl.u32 %v163, 7
      %v165 = vsub.s32 %v162, %v164
      %v166 = vrot.slane %v124, %v165
      %vm167 = vcmask 195712
      %v168 = vsel %vm167, %v166, %v161
      %v169 = vadd.s32 %v150, 4294967272
      %v170 = vlaneseq
      %v171 = vshrl.u32 %v170, 7
      %v172 = vsub.s32 %v169, %v171
      %v173 = vrot.slane %v125, %v172
      %vm174 = vcmask 261312
      %v175 = vsel %vm174, %v173, %v168
      %v176 = vlaneseq
      %v177 = vshrl.u32 %v176, 7
      %v178 = vsub.s32 %v150, %v177
      %v179 = vrot.slane %v126, %v178
      %v180 = vlaneseq
      %v181 = vshrl.u32 %v180, 7
      %v182 = vsub.s32 %v155, %v181
      %v183 = vrot.slane %v127, %v182
      %v184 = vsel %vm160, %v183, %v179
      %v185 = vlaneseq
      %v186 = vshrl.u32 %v185, 7
      %v187 = vsub.s32 %v162, %v186
      %v188 = vrot.slane %v128, %v187
      %v189 = vsel %vm167, %v188, %v184
      %v190 = vlaneseq
      %v191 = vshrl.u32 %v190, 7
      %v192 = vsub.s32 %v169, %v191
      %v193 = vrot.slane %v129, %v192
      %v194 = vsel %vm174, %v193, %v189
      %vm195 = vcmask 1041409
      %v196 = vsel %vm195, %v194, %v175
      %vm197 = vcmask 261120
      %v198 = vsel %vm197, %v196, 0
      %200 = vmatprep.subr.mxu0 0.0
      %201 = vmatpush1.msra.mxu0 %v130
      %202 = vmatprep.subr.mxu0 0.0
      %203 = vmatpush1.msra.mxu0 %v131
      %204 = vmatprep.subr.mxu0 0.0
      %205 = vmatpush1.msra.mxu0 %v132
      %206 = vmatprep.subr.mxu0 0.0
      %207 = vmatpush1.msra.mxu0 %v133
      %208 = vmatprep.subr.mxu0 0.0
      %209 = vmatpush1.msra.mxu0 0.0
      %210 = vmatprep.subr.mxu0 0.0
      %211 = vmatpush1.msra.mxu0 0.0
      %212 = vmatprep.subr.mxu0 0.0
      %213 = vmatpush1.msra.mxu0 0.0
      %214 = vmatprep.subr.mxu0 0.0
      %215 = vmatpush1.msra.mxu0 0.0
      %216 = vmatprep.subr.mxu0 0.0
      %217 = vmatpush1.msra.mxu0 0.0
      %218 = vmatprep.subr.mxu0 0.0
      %219 = vmatpush1.msra.mxu0 0.0
      %220 = vmatprep.subr.mxu0 0.0
      %221 = vmatpush1.msra.mxu0 0.0
      %222 = vmatprep.subr.mxu0 0.0
      %223 = vmatpush1.msra.mxu0 0.0
      %224 = vmatprep.subr.mxu0 0.0
      %225 = vmatpush1.msra.mxu0 0.0
      %226 = vmatprep.subr.mxu0 0.0
      %227 = vmatpush1.msra.mxu0 0.0
      %228 = vmatprep.subr.mxu0 0.0
      %229 = vmatpush1.msra.mxu0 0.0
      %230 = vmatprep.subr.mxu0 0.0
      %231 = vmatpush1.msra.mxu0 0.0
      %232 = vmatprep.subr.mxu0 0.0
      %233 = vmatpush1.msra.mxu0 0.0
      %234 = vmatprep.subr.mxu0 0.0
      %235 = vmatpush1.msra.mxu0 0.0
      %236 = vmatprep.subr.mxu0 0.0
      %237 = vmatpush1.msra.mxu0 0.0
      %238 = vmatprep.subr.mxu0 0.0
      %239 = vmatpush1.msra.mxu0 0.0
      %240 = vmatprep.subr.mxu0 0.0
      %241 = vmatpush1.msra.mxu0 0.0
      %242 = vmatprep.subr.mxu0 0.0
      %243 = vmatpush1.msra.mxu0 0.0
      %244 = vmatprep.subr.mxu0 0.0
      %245 = vmatpush1.msra.mxu0 0.0
      %246 = vmatprep.subr.mxu0 0.0
      %247 = vmatpush1.msra.mxu0 0.0
      %248 = vmatprep.subr.mxu0 0.0
      %249 = vmatpush1.msra.mxu0 0.0
      %250 = vmatprep.subr.mxu0 0.0
      %251 = vmatpush1.msra.mxu0 0.0
      %252 = vmatprep.subr.mxu0 0.0
      %253 = vmatpush1.msra.mxu0 0.0
      %254 = vmatprep.subr.mxu0 0.0
      %255 = vmatpush1.msra.mxu0 0.0
      %256 = vmatprep.subr.mxu0 0.0
      %257 = vmatpush1.msra.mxu0 0.0
      %258 = vmatprep.subr.mxu0 0.0
      %259 = vmatpush1.msra.mxu0 0.0
      %260 = vmatprep.subr.mxu0 0.0
      %261 = vmatpush1.msra.mxu0 0.0
      %262 = vmatprep.subr.mxu0 0.0
      %263 = vmatpush1.msra.mxu0 0.0
      %264 = vmatprep.mubr.f32.mxu0 0.0
      %265 = vmatmul.mubr.f32.gmra.mrb[0].mxu0 %v198
      %v266 = vpop.f32.mrb[0].mxu0
      %v267 = vadd.f32 %v139, %v266
      %v268 = vpop.f32.mrb[0].mxu0
      %269 = vdwg.mxu0
      %v270 = vmax.f32 %v267, 0.0
      %v271 = vld [vmem:[%s3] sm:$0x3]
      %v272 = vld [vmem:[%s4] sm:$0x1]
      %v274 = vlaneseq
      %v275 = vshrl.u32 %v274, 7
      %v276 = vsub.s32 0, %v275
      %v277 = vrot.slane %v272, %v276
      %vm279 = vcmask 15360
      %v281 = vsel %vm279, %v270, 0
      %vm283 = vcmask 1041408
      %v285 = vsel %vm283, %v271, 0
      %287 = vmatprep.subr.mxu0 0.0
      %288 = vmatpush1.msra.mxu0 %v285
      %289 = vmatprep.subr.mxu0 0.0
      %290 = vmatpush1.msra.mxu0 0.0
      %291 = vmatprep.subr.mxu0 0.0
      %292 = vmatpush1.msra.mxu0 0.0
      %293 = vmatprep.subr.mxu0 0.0
      %294 = vmatpush1.msra.mxu0 0.0
      %295 = vmatprep.subr.mxu0 0.0
      %296 = vmatpush1.msra.mxu0 0.0
      %297 = vmatprep.subr.mxu0 0.0
      %298 = vmatpush1.msra.mxu0 0.0
      %299 = vmatprep.subr.mxu0 0.0
      %300 = vmatpush1.msra.mxu0 0.0
      %301 = vmatprep.subr.mxu0 0.0
      %302 = vmatpush1.msra.mxu0 0.0
      %303 = vmatprep.subr.mxu0 0.0
      %304 = vmatpush1.msra.mxu0 0.0
      %305 = vmatprep.subr.mxu0 0.0
      %306 = vmatpush1.msra.mxu0 0.0
      %307 = vmatprep.subr.mxu0 0.0
      %308 = vmatpush1.msra.mxu0 0.0
      %309 = vmatprep.subr.mxu0 0.0
      %310 = vmatpush1.msra.mxu0 0.0
      %311 = vmatprep.subr.mxu0 0.0
      %312 = vmatpush1.msra.mxu0 0.0
      %313 = vmatprep.subr.mxu0 0.0
      %314 = vmatpush1.msra.mxu0 0.0
      %315 = vmatprep.subr.mxu0 0.0
      %316 = vmatpush1.msra.mxu0 0.0
      %317 = vmatprep.subr.mxu0 0.0
      %318 = vmatpush1.msra.mxu0 0.0
      %319 = vmatprep.subr.mxu0 0.0
      %320 = vmatpush1.msra.mxu0 0.0
      %321 = vmatprep.subr.mxu0 0.0
      %322 = vmatpush1.msra.mxu0 0.0
      %323 = vmatprep.subr.mxu0 0.0
      %324 = vmatpush1.msra.mxu0 0.0
      %325 = vmatprep.subr.mxu0 0.0
      %326 = vmatpush1.msra.mxu0 0.0
      %327 = vmatprep.subr.mxu0 0.0
      %328 = vmatpush1.msra.mxu0 0.0
      %329 = vmatprep.subr.mxu0 0.0
      %330 = vmatpush1.msra.mxu0 0.0
      %331 = vmatprep.subr.mxu0 0.0
      %332 = vmatpush1.msra.mxu0 0.0
      %333 = vmatprep.subr.mxu0 0.0
      %334 = vmatpush1.msra.mxu0 0.0
      %335 = vmatprep.subr.mxu0 0.0
      %336 = vmatpush1.msra.mxu0 0.0
      %337 = vmatprep.subr.mxu0 0.0
      %338 = vmatpush1.msra.mxu0 0.0
      %339 = vmatprep.subr.mxu0 0.0
      %340 = vmatpush1.msra.mxu0 0.0
      %341 = vmatprep.subr.mxu0 0.0
      %342 = vmatpush1.msra.mxu0 0.0
      %343 = vmatprep.subr.mxu0 0.0
      %344 = vmatpush1.msra.mxu0 0.0
      %345 = vmatprep.subr.mxu0 0.0
      %346 = vmatpush1.msra.mxu0 0.0
      %347 = vmatprep.subr.mxu0 0.0
      %348 = vmatpush1.msra.mxu0 0.0
      %349 = vmatprep.subr.mxu0 0.0
      %350 = vmatpush1.msra.mxu0 0.0
      %351 = vmatprep.mubr.f32.mxu0 0.0
      %352 = vmatmul.mubr.f32.gmra.mrb[0].mxu0 %v281
      %v353 = vpop.f32.mrb[0].mxu0
      %v354 = vadd.f32 %v277, %v353
      %v355 = vpop.f32.mrb[0].mxu0
      %356 = vdwg.mxu0
      %vm357 = vcmask 254976
      %358 = vst.msk [vmem:[#allocation6] sm:$0x3] %vm357, %v354
    $region33: #{tpu_custom_call.1} parent=1 // pred_fallthru
      _
    // Predicated region
    $region34: #{tpu_custom_call.1} parent=1 // pred_check
      _
    $region35: #{tpu_custom_call.1} parent=1 // pred_check_branch
      %360 = sbr.rel (0) target = $region37
    $region36: #{tpu_custom_call.1} parent=1 // pred_region
      %s362 = ssub.s32 32, 32
      %363 = vsyncadd [#allocation5], %s362
      %s365 = sshll.u32 [#allocation6], 4
      %s366 = int_to_ptr.vmem [resolvable:$true] %s365
      %368 = dma.vmem_to_hbm [thread:$0]  %s366, 32, %s5, [#allocation5]
    $region37: #{tpu_custom_call.1} parent=1 // pred_fallthru
      _
    // Predicated region
    $region38: #{tpu_custom_call.1} parent=1 // pred_check
      _
    $region39: #{tpu_custom_call.1} parent=1 // pred_check_branch
      %370 = sbr.rel (0) target = $region41
    $region40: #{tpu_custom_call.1} parent=1 // pred_region
      %371 = dma.done [#allocation5], 32
    $region41: #{tpu_custom_call.1} parent=1 // pred_fallthru
      _
    %372 = vsyncpa [#allocation4], 1
    %373 = vsyncpa [#allocation5], 1

</llo_original>
